<compile_context>
chip_gen: v5e
topology: v5e:2x2
jax: 0.10.0
libtpu: 0.0.40
codegen_flags: <defaults>
</compile_context>

<pallas_src>
import math
from functools import partial

import numpy as np
import jax
import jax.numpy as jnp
from jax.experimental import pallas as pl
from jax.experimental.pallas import tpu as pltpu


_FREQ_CHANNELS = 256            # Timesteps(num_channels=256)
_HALF_DIM = _FREQ_CHANNELS // 2
_MAX_PERIOD = 10000.0


# ------------------------------------------------------------------
# Kernel 1: timestep sincos projection + 2-layer TimestepEmbedding MLP.
# Grid-less (single invocation); every operand is a whole-array VMEM block.
# ------------------------------------------------------------------
def _timestep_mlp_kernel(t_ref, freq_ref, phase_ref,
                         w1_ref, b1_ref, w2_ref, b2_ref,
                         emb_ref, silu_emb_ref):
    # Timesteps(256, flip_sin_to_cos=True, downscale_freq_shift=0):
    #   proj = [cos(t*w), sin(t*w)].  Implemented as sin(t*w + phase) with
    #   phase = pi/2 on the first 128 lanes (-> cos) and 0 on the last 128,
    #   which avoids an in-kernel lane concatenate.
    arg = t_ref[...] * freq_ref[...] + phase_ref[...]                   # (B, 256) f32
    proj = jnp.sin(arg)

    # TimestepEmbedding: linear_1 -> SiLU -> linear_2  (f32 activations).
    w1 = w1_ref[...].astype(jnp.float32)
    h = jnp.dot(proj, w1, preferred_element_type=jnp.float32) + b1_ref[...]
    h = h * jax.nn.sigmoid(h)                                           # SiLU
    w2 = w2_ref[...].astype(jnp.float32)
    emb = jnp.dot(h, w2, preferred_element_type=jnp.float32) + b2_ref[...]

    emb_ref[...] = emb.astype(emb_ref.dtype)
    silu = emb * jax.nn.sigmoid(emb)                                    # SiLU(emb)
    silu_emb_ref[...] = silu.astype(silu_emb_ref.dtype)                 # streamed dtype


# ------------------------------------------------------------------
# Kernel 2: out = SiLU(embedded_timestep) @ w3 + b3, tiled over 6*D columns.
# Pure HBM streaming of w3; grid axis is "parallel" (megacore-friendly).
# ------------------------------------------------------------------
def _scale_shift_kernel(silu_emb_ref, w3_ref, b3_ref, out_ref):
    out_ref[...] = (
        jnp.dot(silu_emb_ref[...], w3_ref[...], preferred_element_type=jnp.float32)
        + b3_ref[...]
    ).astype(out_ref.dtype)


def _pick_lane_tile(total, bytes_per_col, max_tile_bytes=4 << 20):
    """Largest multiple-of-128 divisor of `total` whose (D x tn) tile stays
    under `max_tile_bytes`.  Falls back to the full width when `total` is not
    128-aligned (full-array blocks are always legal)."""
    if total % 128 != 0:
        return total
    cap = max(128, ((max_tile_bytes // max(bytes_per_col, 1)) // 128) * 128)
    best = 128
    tn = 128
    while tn <= min(total, cap):
        if total % tn == 0:
            best = tn
        tn += 128
    return best


@partial(jax.jit, static_argnames=("out_dtype",))
def ada_layer_norm_single_forward(timestep, w1, b1, w2, b2, w3, b3,
                                  out_dtype=jnp.float32):
    """AdaLayerNormSingle forward (use_additional_conditions=False).

    timestep: (B,).  Weights are in (in, out) layout, streamed in their
    native dtype (bf16 recommended):
      w1: (256, D), b1: (D,)   -- TimestepEmbedding.linear_1
      w2: (D, D),   b2: (D,)   -- TimestepEmbedding.linear_2
      w3: (D, 6D),  b3: (6D,)  -- AdaLayerNormSingle.linear
    Returns (out: (B, 6D), embedded_timestep: (B, D)) in `out_dtype`.
    """
    B = timestep.shape[0]
    D = w1.shape[1]
    O = w3.shape[1]                           # 6 * D
    assert w1.shape == (_FREQ_CHANNELS, D)
    assert w2.shape == (D, D) and w3.shape[0] == D

    # sincos frequency / phase tables: trace-time constants under jit.
    freqs = np.exp(-math.log(_MAX_PERIOD)
                   * np.arange(_HALF_DIM, dtype=np.float64) / _HALF_DIM)
    freq_full = jnp.asarray(np.concatenate([freqs, freqs]),
                            dtype=jnp.float32).reshape(1, _FREQ_CHANNELS)
    phase = jnp.asarray(np.concatenate([np.full(_HALF_DIM, np.pi / 2.0),
                                        np.zeros(_HALF_DIM)]),
                        dtype=jnp.float32).reshape(1, _FREQ_CHANNELS)

    t2d = timestep.astype(jnp.float32).reshape(B, 1)
    b1m = b1.astype(jnp.float32).reshape(1, D)
    b2m = b2.astype(jnp.float32).reshape(1, D)
    b3m = b3.astype(jnp.float32).reshape(1, O)

    stream_dtype = w3.dtype                   # SiLU(emb) matches w3 for MXU

    # ---- stage 1: tiny timestep MLP (grid-less, everything VMEM-resident) ----
    emb, silu_emb = pl.pallas_call(
        _timestep_mlp_kernel,
        out_shape=(jax.ShapeDtypeStruct((B, D), out_dtype),
                   jax.ShapeDtypeStruct((B, D), stream_dtype)),
    )(t2d, freq_full, phase, w1, b1m, w2, b2m)

    # ---- stage 2: stream w3 in lane-dense column tiles ----
    w3_col_bytes = D * jnp.dtype(w3.dtype).itemsize
    tn = _pick_lane_tile(O, w3_col_bytes)     # e.g. 1152 at PixArt D=1152
    grid = (O // tn,)

    out = pl.pallas_call(
        _scale_shift_kernel,
        out_shape=jax.ShapeDtypeStruct((B, O), out_dtype),
        grid_spec=pltpu.PrefetchScalarGridSpec(
            num_scalar_prefetch=0,
            grid=grid,
            in_specs=[
                pl.BlockSpec((B, D), lambda n: (0, 0)),    # SiLU(emb), resident
                pl.BlockSpec((D, tn), lambda n: (0, n)),   # w3 column tiles
                pl.BlockSpec((1, tn), lambda n: (0, n)),   # b3 column tiles
            ],
            out_specs=pl.BlockSpec((B, tn), lambda n: (0, n)),
        ),
        compiler_params=pltpu.CompilerParams(
            dimension_semantics=("parallel",),   # no cross-step state -> megacore OK
        ),
    )(silu_emb, w3, b3m)

    return out, emb


# ------------------------------------------------------------------
# Demo / correctness check
# ------------------------------------------------------------------
if __name__ == "__main__":
    B = 2
    embedding_dim = 32            # small demo size; PixArt uses 1152
    D = embedding_dim
    O = 6 * D

    key = jax.random.PRNGKey(0)
    kt, k1, kb1, k2, kb2, k3, kb3 = jax.random.split(key, 7)

    timestep = jax.random.uniform(kt, (B,), dtype=jnp.float32,
                                  minval=0.0, maxval=1000.0)
    # Native bf16 weights (streamed as-is by the kernel); f32 biases.
    w1 = (jax.random.normal(k1, (_FREQ_CHANNELS, D), jnp.float32) * 0.02).astype(jnp.bfloat16)
    b1 = jax.random.normal(kb1, (D,), jnp.float32) * 0.02
    w2 = (jax.random.normal(k2, (D, D), jnp.float32) * 0.02).astype(jnp.bfloat16)
    b2 = jax.random.normal(kb2, (D,), jnp.float32) * 0.02
    w3 = (jax.random.normal(k3, (D, O), jnp.float32) * 0.02).astype(jnp.bfloat16)
    b3 = jax.random.normal(kb3, (O,), jnp.float32) * 0.02

    out, emb = ada_layer_norm_single_forward(timestep, w1, b1, w2, b2, w3, b3)
    out = jax.block_until_ready(out)
    emb = jax.block_until_ready(emb)

    # float64 numpy reference (same math as the PyTorch module with
    # use_additional_conditions=False), using the bf16-rounded weight values.
    def _silu(x):
        return x / (1.0 + np.exp(-x))

    def _np64(x):
        return np.asarray(jnp.asarray(x, jnp.float32), dtype=np.float64)

    t64 = _np64(timestep)
    freqs64 = np.exp(-math.log(_MAX_PERIOD)
                     * np.arange(_HALF_DIM, dtype=np.float64) / _HALF_DIM)
    arg = t64[:, None] * freqs64[None, :]
    proj = np.concatenate([np.cos(arg), np.sin(arg)], axis=-1)   # flip_sin_to_cos=True
    h = _silu(proj @ _np64(w1) + _np64(b1))
    emb_ref = h @ _np64(w2) + _np64(b2)
    out_ref = _silu(emb_ref) @ _np64(w3) + _np64(b3)

    np.testing.assert_allclose(np.asarray(emb, np.float64), emb_ref,
                               rtol=2e-2, atol=1e-3)
    np.testing.assert_allclose(np.asarray(out, np.float64), out_ref,
                               rtol=2e-2, atol=1e-3)

    print("KERNEL_OK")
</pallas_src>

<mosaic_0001>
module attributes {stable_mosaic.version = 11 : i64} {
  func.func @_scale_shift_kernel(%arg0: i32, %arg1: memref<2x32xbf16, #tpu.memory_space<vmem>>, %arg2: memref<32x192xbf16, #tpu.memory_space<vmem>>, %arg3: memref<1x192xf32, #tpu.memory_space<vmem>>, %arg4: memref<2x192xf32, #tpu.memory_space<vmem>>) attributes {dimension_semantics = [#tpu.dimension_semantics<parallel>], iteration_bounds = array<i64: 1>, scalar_prefetch = 0 : i64, scratch_operands = 0 : i64, tpu.core_type = #tpu.core_type<tc>, window_params = [{pipeline_mode = #tpu.pipeline_mode<synchronous>, transform_indices = @transform_0, window_bounds = array<i64: 2, 32>}, {transform_indices = @transform_1, window_bounds = array<i64: 32, 192>}, {transform_indices = @transform_2, window_bounds = array<i64: 1, 192>}, {transform_indices = @transform_3, window_bounds = array<i64: 2, 192>}]} {
    %c0 = arith.constant 0 : index
    %c0_0 = arith.constant 0 : index
    %0 = vector.load %arg1[%c0, %c0_0] : memref<2x32xbf16, #tpu.memory_space<vmem>>, vector<2x32xbf16>
    %c0_1 = arith.constant 0 : index
    %c0_2 = arith.constant 0 : index
    %1 = vector.load %arg2[%c0_1, %c0_2] : memref<32x192xbf16, #tpu.memory_space<vmem>>, vector<32x192xbf16>
    %cst = arith.constant dense<0.000000e+00> : vector<2x192xf32>
    %2 = tpu.matmul %0, %1, %cst {dimension_numbers = #tpu.dot_dimension_numbers<[1], [0], [0], [1], [0, 0, 1, 1], [], []>} : vector<2x32xbf16>, vector<32x192xbf16>, vector<2x192xf32> -> vector<2x192xf32>
    %c0_3 = arith.constant 0 : index
    %c0_4 = arith.constant 0 : index
    %3 = vector.load %arg3[%c0_3, %c0_4] : memref<1x192xf32, #tpu.memory_space<vmem>>, vector<1x192xf32>
    %4 = vector.broadcast %3 : vector<1x192xf32> to vector<2x192xf32>
    %5 = arith.addf %2, %4 : vector<2x192xf32>
    %c0_5 = arith.constant 0 : index
    %c0_6 = arith.constant 0 : index
    %6 = vector.load %arg4[%c0_5, %c0_6] : memref<2x192xf32, #tpu.memory_space<vmem>>, vector<2x192xf32>
    tpu.vector_store %arg4[%c0_5, %c0_6], %5 {strides = array<i32>} : memref<2x192xf32, #tpu.memory_space<vmem>>, vector<2x192xf32>,
    return
  }
  func.func @transform_0(%arg0: i32) -> (i32, i32) {
    %c0_i32 = arith.constant 0 : i32
    %c0_i32_0 = arith.constant 0 : i32
    %c0_i32_1 = arith.constant 0 : i32
    return %c0_i32, %c0_i32_0 : i32, i32
  }
  func.func @transform_1(%arg0: i32) -> (i32, i32) {
    %c0_i32 = arith.constant 0 : i32
    %c0_i32_0 = arith.constant 0 : i32
    return %c0_i32, %arg0 : i32, i32
  }
  func.func @transform_2(%arg0: i32) -> (i32, i32) {
    %c0_i32 = arith.constant 0 : i32
    %c0_i32_0 = arith.constant 0 : i32
    return %c0_i32, %arg0 : i32, i32
  }
  func.func @transform_3(%arg0: i32) -> (i32, i32) {
    %c0_i32 = arith.constant 0 : i32
    %c0_i32_0 = arith.constant 0 : i32
    return %c0_i32, %arg0 : i32, i32
  }
}

module attributes {stable_mosaic.version = 11 : i64} {
  func.func @_timestep_mlp_kernel(%arg0: memref<2x1xf32, #tpu.memory_space<vmem>>, %arg1: memref<1x256xf32, #tpu.memory_space<vmem>>, %arg2: memref<1x256xf32, #tpu.memory_space<vmem>>, %arg3: memref<256x32xbf16, #tpu.memory_space<vmem>>, %arg4: memref<1x32xf32, #tpu.memory_space<vmem>>, %arg5: memref<32x32xbf16, #tpu.memory_space<vmem>>, %arg6: memref<1x32xf32, #tpu.memory_space<vmem>>, %arg7: memref<2x32xf32, #tpu.memory_space<vmem>>, %arg8: memref<2x32xbf16, #tpu.memory_space<vmem>>) attributes {dimension_semantics = [], scalar_prefetch = 0 : i64, scratch_operands = 0 : i64, tpu.core_type = #tpu.core_type<tc>} {
    %c0 = arith.constant 0 : index
    %c0_0 = arith.constant 0 : index
    %0 = vector.load %arg0[%c0, %c0_0] : memref<2x1xf32, #tpu.memory_space<vmem>>, vector<2x1xf32>
    %c0_1 = arith.constant 0 : index
    %c0_2 = arith.constant 0 : index
    %1 = vector.load %arg1[%c0_1, %c0_2] : memref<1x256xf32, #tpu.memory_space<vmem>>, vector<1x256xf32>
    %2 = vector.broadcast %0 : vector<2x1xf32> to vector<2x256xf32>
    %3 = vector.broadcast %1 : vector<1x256xf32> to vector<2x256xf32>
    %4 = arith.mulf %2, %3 : vector<2x256xf32>
    %c0_3 = arith.constant 0 : index
    %c0_4 = arith.constant 0 : index
    %5 = vector.load %arg2[%c0_3, %c0_4] : memref<1x256xf32, #tpu.memory_space<vmem>>, vector<1x256xf32>
    %6 = vector.broadcast %5 : vector<1x256xf32> to vector<2x256xf32>
    %7 = arith.addf %4, %6 : vector<2x256xf32>
    %8 = math.sin %7 : vector<2x256xf32>
    %c0_5 = arith.constant 0 : index
    %c0_6 = arith.constant 0 : index
    %9 = vector.load %arg3[%c0_5, %c0_6] : memref<256x32xbf16, #tpu.memory_space<vmem>>, vector<256x32xbf16>
    %10 = arith.extf %9 : vector<256x32xbf16> to vector<256x32xf32>
    %cst = arith.constant dense<0.000000e+00> : vector<2x32xf32>
    %11 = tpu.matmul %8, %10, %cst {dimension_numbers = #tpu.dot_dimension_numbers<[1], [0], [0], [1], [0, 0, 1, 1], [], []>} : vector<2x256xf32>, vector<256x32xf32>, vector<2x32xf32> -> vector<2x32xf32>
    %c0_7 = arith.constant 0 : index
    %c0_8 = arith.constant 0 : index
    %12 = vector.load %arg4[%c0_7, %c0_8] : memref<1x32xf32, #tpu.memory_space<vmem>>, vector<1x32xf32>
    %13 = vector.broadcast %12 : vector<1x32xf32> to vector<2x32xf32>
    %14 = arith.addf %11, %13 : vector<2x32xf32>
    %15 = arith.negf %14 : vector<2x32xf32>
    %16 = math.exp %15 : vector<2x32xf32>
    %cst_9 = arith.constant 1.000000e+00 : f32
    %17 = vector.broadcast %cst_9 : f32 to vector<2x32xf32>
    %18 = arith.addf %17, %16 : vector<2x32xf32>
    %19 = arith.divf %17, %18 : vector<2x32xf32>
    %20 = arith.mulf %14, %19 : vector<2x32xf32>
    %c0_10 = arith.constant 0 : index
    %c0_11 = arith.constant 0 : index
    %21 = vector.load %arg5[%c0_10, %c0_11] : memref<32x32xbf16, #tpu.memory_space<vmem>>, vector<32x32xbf16>
    %22 = arith.extf %21 : vector<32x32xbf16> to vector<32x32xf32>
    %cst_12 = arith.constant dense<0.000000e+00> : vector<2x32xf32>
    %23 = tpu.matmul %20, %22, %cst_12 {dimension_numbers = #tpu.dot_dimension_numbers<[1], [0], [0], [1], [0, 0, 1, 1], [], []>} : vector<2x32xf32>, vector<32x32xf32>, vector<2x32xf32> -> vector<2x32xf32>
    %c0_13 = arith.constant 0 : index
    %c0_14 = arith.constant 0 : index
    %24 = vector.load %arg6[%c0_13, %c0_14] : memref<1x32xf32, #tpu.memory_space<vmem>>, vector<1x32xf32>
    %25 = vector.broadcast %24 : vector<1x32xf32> to vector<2x32xf32>
    %26 = arith.addf %23, %25 : vector<2x32xf32>
    %c0_15 = arith.constant 0 : index
    %c0_16 = arith.constant 0 : index
    %27 = vector.load %arg7[%c0_15, %c0_16] : memref<2x32xf32, #tpu.memory_space<vmem>>, vector<2x32xf32>
    tpu.vector_store %arg7[%c0_15, %c0_16], %26 {strides = array<i32>} : memref<2x32xf32, #tpu.memory_space<vmem>>, vector<2x32xf32>,
    %28 = arith.negf %26 : vector<2x32xf32>
    %29 = math.exp %28 : vector<2x32xf32>
    %cst_17 = arith.constant 1.000000e+00 : f32
    %30 = vector.broadcast %cst_17 : f32 to vector<2x32xf32>
    %31 = arith.addf %30, %29 : vector<2x32xf32>
    %32 = arith.divf %30, %31 : vector<2x32xf32>
    %33 = arith.mulf %26, %32 : vector<2x32xf32>
    %34 = arith.truncf %33 : vector<2x32xf32> to vector<2x32xbf16>
    %c0_18 = arith.constant 0 : index
    %c0_19 = arith.constant 0 : index
    %35 = vector.load %arg8[%c0_18, %c0_19] : memref<2x32xbf16, #tpu.memory_space<vmem>>, vector<2x32xbf16>
    tpu.vector_store %arg8[%c0_18, %c0_19], %34 {strides = array<i32>} : memref<2x32xbf16, #tpu.memory_space<vmem>>, vector<2x32xbf16>,
    return
  }
}

</mosaic_0001>

<llo_original>
// kernel: ada_layer_norm_single_forward.3
$region0: #{ada_layer_norm_single_forward.3}
  #allocation0 [shape = 'u32[]', space=smem, size = 0x4, offset = 0x4, fixed_abs, tag = 'smem constant byte address 0x4 - core index']
  #allocation1 [shape = 'u32[72,128]{1,0:T(1,128)}', space=vmem, size = 0x9000, scoped, tag = 'internal scratch']
  %s0 = inlined_call_operand.vmem [shape: bf16[2,32], index: 0, kind: input, shape index: {}]
  %s1 = inlined_call_operand.vmem [shape: bf16[32,192], index: 1, kind: input, shape index: {}]
  %s2 = inlined_call_operand.vmem [shape: f32[1,192], index: 2, kind: input, shape index: {}]
  %s3 = inlined_call_operand.hbm [shape: f32[2,192], index: 3, kind: output, shape index: {}]
  %s4 = sld [smem:[#allocation0]]
  $region22: #{ada_layer_norm_single_forward.3} parent=0
    _
  %s6 = ssub.s32 1, %s4
  %s7 = scalar_select 0, %s6, %s4
  $region1: #{ada_layer_norm_single_forward.3} parent=0
    #allocation2 [shape = 'u8[2048]{0}', space=vmem, size = 0x800, scoped, tag = 'output window, operand 0, single buffered']
    #allocation3 [shape = 's32[1]{0}', space=sflag, size = 0x4, scoped, tag = 'scoped memory for ada_layer_norm_single_forward.3']
    %8 = vsyncpa [#allocation3], 0
    // Predicated region
    $region2: #{ada_layer_norm_single_forward.3} parent=1 // pred_check
      _
    $region3: #{ada_layer_norm_single_forward.3} parent=1 // pred_check_branch
      %10 = sbr.rel (0) target = $region5
    $region4: #{ada_layer_norm_single_forward.3} parent=1 // pred_region
      _
    $region5: #{ada_layer_norm_single_forward.3} parent=1 // pred_fallthru
      _
    // Predicated region
    $region6: #{ada_layer_norm_single_forward.3} parent=1 // pred_check
      _
    $region7: #{ada_layer_norm_single_forward.3} parent=1 // pred_check_branch
      %12 = sbr.rel (0) target = $region9
    $region8: #{ada_layer_norm_single_forward.3} parent=1 // pred_region
      _
    $region9: #{ada_layer_norm_single_forward.3} parent=1 // pred_fallthru
      _
    // Predicated region
    $region10: #{ada_layer_norm_single_forward.3} parent=1 // pred_check
      _
    $region11: #{ada_layer_norm_single_forward.3} parent=1 // pred_check_branch
      %14 = sbr.rel (0) target = $region13
    $region12: #{ada_layer_norm_single_forward.3} parent=1 // pred_region
      _
    $region13: #{ada_layer_norm_single_forward.3} parent=1 // pred_fallthru
      _
    %v16 = vld [vmem:[%s0] sm:$0x1]
    %v17 = vld [vmem:[%s1] sm:$0xff]
    %v18 = vld [vmem:[%s1 + $0x8] sm:$0xff]
    %v19 = vld [vmem:[%s1 + $0x10] sm:$0xff]
    %v20 = vld [vmem:[%s1 + $0x18] sm:$0xff]
    %v21 = vld [vmem:[%s2] sm:$0x3]
    %v23 = vperm.slane %v21, 0
    %v24 = vperm.slane %v21, 1
    %v31 = vunpack.c.l.b16 %v17
    %v32 = vunpack.c.h.b16 %v17
    %v33 = vunpack.c.l.b16 %v18
    %v34 = vunpack.c.h.b16 %v18
    %v35 = vunpack.c.l.b16 %v19
    %v36 = vunpack.c.h.b16 %v19
    %v37 = vunpack.c.l.b16 %v20
    %v38 = vunpack.c.h.b16 %v20
    %v39 = vpack.c.b16 %v33, %v31
    %v40 = vpack.c.b16 %v34, %v32
    %v41 = vpack.c.b16 %v37, %v35
    %v42 = vpack.c.b16 %v38, %v36
    %vm47 = vcmask 261120
    %v49 = vsel %vm47, %v16, 0
    %51 = vmatpush.bf16.msra.mxu0 0
    %52 = vmatpush.bf16.msra.mxu0 0
    %53 = vmatpush.bf16.msra.mxu0 0
    %54 = vmatpush.bf16.msra.mxu0 0
    %55 = vmatpush.bf16.msra.mxu0 0
    %56 = vmatpush.bf16.msra.mxu0 0
    %57 = vmatpush.bf16.msra.mxu0 %v41
    %58 = vmatpush.bf16.msra.mxu0 %v39
    %59 = vmatmul.bf16.gmra.mxu0 %v49
    %v60 = vpop.f32.mrf.mxu0
    %v61 = vadd.f32 %v23, %v60
    %v62 = vpop.f32.mrf.mxu0
    %63 = vdwg.mxu0
    %64 = vmatpush.bf16.msra.mxu0 0
    %65 = vmatpush.bf16.msra.mxu0 0
    %66 = vmatpush.bf16.msra.mxu0 0
    %67 = vmatpush.bf16.msra.mxu0 0
    %68 = vmatpush.bf16.msra.mxu0 0
    %69 = vmatpush.bf16.msra.mxu0 0
    %70 = vmatpush.bf16.msra.mxu0 %v42
    %71 = vmatpush.bf16.msra.mxu0 %v40
    %72 = vmatmul.bf16.gmra.mxu0 %v49
    %v73 = vpop.f32.mrf.mxu0
    %v74 = vadd.f32 %v24, %v73
    %v75 = vpop.f32.mrf.mxu0
    %76 = vdwg.mxu0
    %v79 = vrot.slane %v74, 6
    %vm80 = vcmask 1041408
    %v81 = vsel %vm80, %v61, %v79
    %vm83 = vcmask 519170
    %vm84 = vmor %vm83, %vm80
    %85 = vst.msk [vmem:[#allocation2] sm:$0xf] %vm84, %v81
    // Predicated region
    $region14: #{ada_layer_norm_single_forward.3} parent=1 // pred_check
      _
    $region15: #{ada_layer_norm_single_forward.3} parent=1 // pred_check_branch
      %87 = sbr.rel (0) target = $region17
    $region16: #{ada_layer_norm_single_forward.3} parent=1 // pred_region
      %89 = vsyncadd [#allocation3], 0
      %s91 = sshll.u32 [#allocation2], 4
      %s92 = int_to_ptr.vmem [resolvable:$true] %s91
      %s93 = sshll.u32 %s3, 4
      %s94 = int_to_ptr.hbm [resolvable:$true] %s93
      %96 = dma.vmem_to_hbm [thread:$0]  %s92, 64, %s94, [#allocation3]
    $region17: #{ada_layer_norm_single_forward.3} parent=1 // pred_fallthru
      _
    // Predicated region
    $region18: #{ada_layer_norm_single_forward.3} parent=1 // pred_check
      _
    $region19: #{ada_layer_norm_single_forward.3} parent=1 // pred_check_branch
      %98 = sbr.rel (0) target = $region21
    $region20: #{ada_layer_norm_single_forward.3} parent=1 // pred_region
      %100 = dma.done [#allocation3], 64
    $region21: #{ada_layer_norm_single_forward.3} parent=1 // pred_fallthru
      _
    %101 = vsyncpa [#allocation3], 1

// kernel: ada_layer_norm_single_forward.2
$region0: #{ada_layer_norm_single_forward.2}
  #allocation0 [shape = 'u32[]', space=smem, size = 0x4, offset = 0x4, fixed_abs, tag = 'smem constant byte address 0x4 - core index']
  #allocation1 [shape = 'u32[72,128]{1,0:T(1,128)}', space=vmem, size = 0x9000, scoped, tag = 'internal scratch']
  %s0 = inlined_call_operand.vmem [shape: f32[2,1], index: 0, kind: input, shape index: {}]
  %s1 = inlined_call_operand.vmem [shape: f32[1,256], index: 1, kind: input, shape index: {}]
  %s2 = inlined_call_operand.vmem [shape: f32[1,256], index: 2, kind: input, shape index: {}]
  %s3 = inlined_call_operand.vmem [shape: bf16[256,32], index: 3, kind: input, shape index: {}]
  %s4 = inlined_call_operand.vmem [shape: f32[1,32], index: 4, kind: input, shape index: {}]
  %s5 = inlined_call_operand.vmem [shape: bf16[32,32], index: 5, kind: input, shape index: {}]
  %s6 = inlined_call_operand.vmem [shape: f32[1,32], index: 6, kind: input, shape index: {}]
  %s7 = inlined_call_operand.hbm [shape: f32[2,32], index: 7, kind: output, shape index: {0}]
  %s8 = inlined_call_operand.vmem [shape: bf16[2,32], index: 8, kind: output, shape index: {1}]
  %9 = xla_tuple %s7, %s8
  %s10 = sld [smem:[#allocation0]]
  $region46: #{ada_layer_norm_single_forward.2} parent=0
    _
  %s12 = ssub.s32 1, %s10
  %s13 = scalar_select 0, %s12, %s10
  $region1: #{ada_layer_norm_single_forward.2} parent=0
    #allocation2 [shape = 'u8[1024]{0}', space=vmem, size = 0x400, scoped, tag = 'output window, operand 0, single buffered']
    #allocation3 [shape = 's32[1]{0}', space=sflag, size = 0x4, scoped, tag = 'scoped memory for ada_layer_norm_single_forward.2']
    %14 = vsyncpa [#allocation3], 0
    // Predicated region
    $region2: #{ada_layer_norm_single_forward.2} parent=1 // pred_check
      _
    $region3: #{ada_layer_norm_single_forward.2} parent=1 // pred_check_branch
      %16 = sbr.rel (0) target = $region5
    $region4: #{ada_layer_norm_single_forward.2} parent=1 // pred_region
      _
    $region5: #{ada_layer_norm_single_forward.2} parent=1 // pred_fallthru
      _
    // Predicated region
    $region6: #{ada_layer_norm_single_forward.2} parent=1 // pred_check
      _
    $region7: #{ada_layer_norm_single_forward.2} parent=1 // pred_check_branch
      %18 = sbr.rel (0) target = $region9
    $region8: #{ada_layer_norm_single_forward.2} parent=1 // pred_region
      _
    $region9: #{ada_layer_norm_single_forward.2} parent=1 // pred_fallthru
      _
    // Predicated region
    $region10: #{ada_layer_norm_single_forward.2} parent=1 // pred_check
      _
    $region11: #{ada_layer_norm_single_forward.2} parent=1 // pred_check_branch
      %20 = sbr.rel (0) target = $region13
    $region12: #{ada_layer_norm_single_forward.2} parent=1 // pred_region
      _
    $region13: #{ada_layer_norm_single_forward.2} parent=1 // pred_fallthru
      _
    // Predicated region
    $region14: #{ada_layer_norm_single_forward.2} parent=1 // pred_check
      _
    $region15: #{ada_layer_norm_single_forward.2} parent=1 // pred_check_branch
      %22 = sbr.rel (0) target = $region17
    $region16: #{ada_layer_norm_single_forward.2} parent=1 // pred_region
      _
    $region17: #{ada_layer_norm_single_forward.2} parent=1 // pred_fallthru
      _
    // Predicated region
    $region18: #{ada_layer_norm_single_forward.2} parent=1 // pred_check
      _
    $region19: #{ada_layer_norm_single_forward.2} parent=1 // pred_check_branch
      %24 = sbr.rel (0) target = $region21
    $region20: #{ada_layer_norm_single_forward.2} parent=1 // pred_region
      _
    $region21: #{ada_layer_norm_single_forward.2} parent=1 // pred_fallthru
      _
    // Predicated region
    $region22: #{ada_layer_norm_single_forward.2} parent=1 // pred_check
      _
    $region23: #{ada_layer_norm_single_forward.2} parent=1 // pred_check_branch
      %26 = sbr.rel (0) target = $region25
    $region24: #{ada_layer_norm_single_forward.2} parent=1 // pred_region
      _
    $region25: #{ada_layer_norm_single_forward.2} parent=1 // pred_fallthru
      _
    // Predicated region
    $region26: #{ada_layer_norm_single_forward.2} parent=1 // pred_check
      _
    $region27: #{ada_layer_norm_single_forward.2} parent=1 // pred_check_branch
      %28 = sbr.rel (0) target = $region29
    $region28: #{ada_layer_norm_single_forward.2} parent=1 // pred_region
      _
    $region29: #{ada_layer_norm_single_forward.2} parent=1 // pred_fallthru
      _
    %v29 = vld [vmem:[%s0] sm:$0x3]
    %v30 = vld [vmem:[%s1] sm:$0x3]
    %32 = vset.pattern.permute.xlu0 0
    %33 = vperm.xlu0 %32, %v29
    %v34 = vpop.permute.xlu0 %33
    %v37 = vperm.slane %v30, 0
    %v38 = vperm.slane %v30, 1
    %v41 = vmul.f32 %v34, %v37
    %v42 = vmul.f32 %v34, %v38
    %v43 = vld [vmem:[%s2] sm:$0x3]
    %v45 = vperm.slane %v43, 0
    %v46 = vperm.slane %v43, 1
    %v49 = vadd.f32 %v41, %v45
    %v50 = vadd.f32 %v42, %v46
    %v51 = vand.u32 2147483647, %v49
    %vm52 = vcmp.le.f32.partialorder %v51, 0.7853982
    %vm53 = vcmp.lt.s32.totalorder %v49, 0
    %v54 = vand.u32 %v49, 2139095040
    %v55 = vshrl.u32 %v54, 23
    %v56 = vsub.s32 %v55, 127
    %v57 = vand.u32 2147483647, %v49
    %v58 = vand.u32 %v57, 8388607
    %v59 = vor.u32 %v58, 8388608
    %v60 = vsub.s32 0, %v59
    %v61 = vadd.s32 %v56, 1
    %vm62 = vcmp.gt.s32.totalorder %v61, 0
    %v63 = vsel %vm62, %v61, 0
    %v64 = vshrl.u32 %v63, 5
    %v65 = vand.u32 %v63, 31
    %v66 = vsub.s32 32, %v65
    %v67 = vshrl.u32 683565275, %v66
    %v68 = vshll.u32 683565275, %v65
    %v69 = vshrl.u32 2475754826, %v66
    %v70 = vor.u32 %v68, %v69
    %v71 = vshll.u32 2475754826, %v65
    %v72 = vshrl.u32 2131351028, %v66
    %v73 = vor.u32 %v71, %v72
    %v74 = vshll.u32 2131351028, %v65
    %v75 = vshrl.u32 2102212464, %v66
    %v76 = vor.u32 %v74, %v75
    %v77 = vshll.u32 2102212464, %v65
    %v78 = vshrl.u32 920167782, %v66
    %v79 = vor.u32 %v77, %v78
    %v80 = vshll.u32 920167782, %v65
    %v81 = vshrl.u32 1326507024, %v66
    %v82 = vor.u32 %v80, %v81
    %vm83 = vcmp.lt.s32.totalorder %v64, 1
    %vm84 = vcmp.lt.s32.totalorder %v64, 2
    %vm85 = vcmp.lt.s32.totalorder %v64, 3
    %vm86 = vcmp.lt.s32.totalorder %v64, 4
    %v87 = vsel %vm83, %v67, %v70
    %v88 = vsel %vm86, %v76, 2102212464
    %v89 = vsel %vm85, %v73, %v88
    %v90 = vsel %vm84, %v87, %v89
    %v91 = vsel %vm83, %v70, %v73
    %v92 = vsel %vm86, %v79, 920167782
    %v93 = vsel %vm85, %v76, %v92
    %v94 = vsel %vm84, %v91, %v93
    %v95 = vsel %vm83, %v73, %v76
    %v96 = vsel %vm86, %v82, 1326507024
    %v97 = vsel %vm85, %v79, %v96
    %v98 = vsel %vm84, %v95, %v97
    %v99 = vshll.u32 %v59, 8
    %v100 = vand.u32 %v99, 65535
    %v101 = vshrl.u32 %v99, 16
    %v102 = vand.u32 %v98, 65535
    %v103 = vshrl.u32 %v98, 16
    %v104 = vmul.u32 %v100, %v102
    %v105 = vmul.u32 %v100, %v103
    %v106 = vmul.u32 %v101, %v102
    %v107 = vmul.u32 %v101, %v103
    %v108 = vshll.u32 %v105, 16
    %v109 = vshrl.u32 %v105, 16
    %v110 = vshll.u32 %v106, 16
    %v111 = vshrl.u32 %v106, 16
    %vm112 = vc.u32 %v104, %v108
    %v113 = vsel %vm112, 1, 0
    %v114 = vadd.s32 %v104, %v108
    %v115 = vadd.s32 %v107, %v113
    %vm116 = vc.u32 %v114, %v110
    %v117 = vsel %vm116, 1, 0
    %v118 = vadd.s32 %v114, %v110
    %v119 = vadd.s32 %v115, %v117
    %v120 = vadd.s32 %v119, %v109
    %v121 = vadd.s32 %v120, %v111
    %v122 = vand.u32 %v99, 65535
    %v123 = vshrl.u32 %v99, 16
    %v124 = vand.u32 %v94, 65535
    %v125 = vshrl.u32 %v94, 16
    %v126 = vmul.u32 %v122, %v124
    %v127 = vmul.u32 %v122, %v125
    %v128 = vmul.u32 %v123, %v124
    %v129 = vmul.u32 %v123, %v125
    %v130 = vshll.u32 %v127, 16
    %v131 = vshrl.u32 %v127, 16
    %v132 = vshll.u32 %v128, 16
    %v133 = vshrl.u32 %v128, 16
    %vm134 = vc.u32 %v126, %v130
    %v135 = vsel %vm134, 1, 0
    %v136 = vadd.s32 %v126, %v130
    %v137 = vadd.s32 %v129, %v135
    %vm138 = vc.u32 %v136, %v132
    %v139 = vsel %vm138, 1, 0
    %v140 = vadd.s32 %v136, %v132
    %v141 = vadd.s32 %v137, %v139
    %v142 = vadd.s32 %v141, %v131
    %v143 = vadd.s32 %v142, %v133
    %v144 = vmul.u32 %v99, %v90
    %v145 = vadd.s32 %v121, %v140
    %vm146 = vc.u32 %v121, %v140
    %v147 = vadd.s32 %v143, 1
    %v148 = vsel %vm146, %v147, %v143
    %v149 = vadd.s32 %v144, %v148
    %v150 = vadd.s32 %v149, 536870912
    %v151 = vshrl.u32 %v150, 30
    %v152 = vshll.u32 %v151, 30
    %v153 = vsub.s32 %v149, %v152
    %vm154 = vcmp.lt.s32.totalorder %v153, 0
    %v155 = vsub.s32 0, %v153
    %v156 = vsel %vm154, %v155, %v153
    %v157 = vclz %v156
    %v158 = vsub.s32 %v157, 2
    %vm159 = vcmp.gt.s32.totalorder 0, %v158
    %v160 = vsel %vm159, 0, %v158
    %v161 = vsub.s32 32, %v160
    %v162 = vshll.u32 %v153, %v160
    %v163 = vshrl.u32 %v145, %v161
    %v164 = vor.u32 %v162, %v163
    %v165 = vsub.s32 4294967266, %v160
    %v166 = vadd.s32 %v165, 127
    %v167 = vshll.u32 %v166, 23
    %v168 = vor.u32 4788187, %v167
    %v169 = vand.u32 2147483647, %v168
    %v171 = vcvt.s32.f32 %v164
    %v172 = vmul.f32 %v171, %v169
    %v173 = vxor.u32 %v172, 2147483648
    %v174 = vsel %vm53, %v173, %v172
    %v175 = vsub.s32 4, %v151
    %v176 = vsel %vm53, %v175, %v151
    %v177 = vsel %vm52, %v49, %v174
    %v178 = vsel %vm52, 0, %v176
    %v179 = vmul.f32 %v177, %v177
    %v180 = vmul.f32 %v179, -0.001358992
    %v181 = vadd.f32 %v180, 0.041655596
    %v182 = vmul.f32 %v179, %v181
    %v183 = vadd.f32 %v182, -0.4999988
    %v184 = vmul.f32 %v179, %v183
    %v185 = vadd.f32 1.0, %v184
    %v186 = vmul.f32 %v177, %v177
    %v187 = vmul.f32 %v186, -0.00019511016
    %v188 = vadd.f32 %v187, 0.008332121
    %v189 = vmul.f32 %v186, %v188
    %v190 = vadd.f32 %v189, -0.16666654
    %v191 = vmul.f32 %v186, %v190
    %v192 = vadd.f32 %v191, 1.0
    %v193 = vmul.f32 %v192, %v177
    %vm194 = vweird.f32 %v49
    %v195 = vadd.s32 %v178, 3
    %v196 = vand.u32 %v195, 3
    %vm197 = vcmp.lt.s32.totalorder %v196, 2
    %vm198 = vcmp.eq.s32.totalorder %v196, 0
    %v199 = vxor.u32 %v193, 2147483648
    %v200 = vsel %vm198, %v185, %v199
    %vm201 = vcmp.eq.s32.totalorder %v196, 2
    %v202 = vxor.u32 %v185, 2147483648
    %v203 = vsel %vm201, %v202, %v193
    %v204 = vsel %vm197, %v200, %v203
    %v205 = vsel %vm194, nan, %v204
    %v206 = vand.u32 2147483647, %v50
    %vm207 = vcmp.le.f32.partialorder %v206, 0.7853982
    %vm208 = vcmp.lt.s32.totalorder %v50, 0
    %v209 = vand.u32 %v50, 2139095040
    %v210 = vshrl.u32 %v209, 23
    %v211 = vsub.s32 %v210, 127
    %v212 = vand.u32 2147483647, %v50
    %v213 = vand.u32 %v212, 8388607
    %v214 = vor.u32 %v213, 8388608
    %v215 = vsub.s32 0, %v214
    %v216 = vadd.s32 %v211, 1
    %vm217 = vcmp.gt.s32.totalorder %v216, 0
    %v218 = vsel %vm217, %v216, 0
    %v219 = vshrl.u32 %v218, 5
    %v220 = vand.u32 %v218, 31
    %v221 = vsub.s32 32, %v220
    %v222 = vshrl.u32 683565275, %v221
    %v223 = vshll.u32 683565275, %v220
    %v224 = vshrl.u32 2475754826, %v221
    %v225 = vor.u32 %v223, %v224
    %v226 = vshll.u32 2475754826, %v220
    %v227 = vshrl.u32 2131351028, %v221
    %v228 = vor.u32 %v226, %v227
    %v229 = vshll.u32 2131351028, %v220
    %v230 = vshrl.u32 2102212464, %v221
    %v231 = vor.u32 %v229, %v230
    %v232 = vshll.u32 2102212464, %v220
    %v233 = vshrl.u32 920167782, %v221
    %v234 = vor.u32 %v232, %v233
    %v235 = vshll.u32 920167782, %v220
    %v236 = vshrl.u32 1326507024, %v221
    %v237 = vor.u32 %v235, %v236
    %vm238 = vcmp.lt.s32.totalorder %v219, 1
    %vm239 = vcmp.lt.s32.totalorder %v219, 2
    %vm240 = vcmp.lt.s32.totalorder %v219, 3
    %vm241 = vcmp.lt.s32.totalorder %v219, 4
    %v242 = vsel %vm238, %v222, %v225
    %v243 = vsel %vm241, %v231, 2102212464
    %v244 = vsel %vm240, %v228, %v243
    %v245 = vsel %vm239, %v242, %v244
    %v246 = vsel %vm238, %v225, %v228
    %v247 = vsel %vm241, %v234, 920167782
    %v248 = vsel %vm240, %v231, %v247
    %v249 = vsel %vm239, %v246, %v248
    %v250 = vsel %vm238, %v228, %v231
    %v251 = vsel %vm241, %v237, 1326507024
    %v252 = vsel %vm240, %v234, %v251
    %v253 = vsel %vm239, %v250, %v252
    %v254 = vshll.u32 %v214, 8
    %v255 = vand.u32 %v254, 65535
    %v256 = vshrl.u32 %v254, 16
    %v257 = vand.u32 %v253, 65535
    %v258 = vshrl.u32 %v253, 16
    %v259 = vmul.u32 %v255, %v257
    %v260 = vmul.u32 %v255, %v258
    %v261 = vmul.u32 %v256, %v257
    %v262 = vmul.u32 %v256, %v258
    %v263 = vshll.u32 %v260, 16
    %v264 = vshrl.u32 %v260, 16
    %v265 = vshll.u32 %v261, 16
    %v266 = vshrl.u32 %v261, 16
    %vm267 = vc.u32 %v259, %v263
    %v268 = vsel %vm267, 1, 0
    %v269 = vadd.s32 %v259, %v263
    %v270 = vadd.s32 %v262, %v268
    %vm271 = vc.u32 %v269, %v265
    %v272 = vsel %vm271, 1, 0
    %v273 = vadd.s32 %v269, %v265
    %v274 = vadd.s32 %v270, %v272
    %v275 = vadd.s32 %v274, %v264
    %v276 = vadd.s32 %v275, %v266
    %v277 = vand.u32 %v254, 65535
    %v278 = vshrl.u32 %v254, 16
    %v279 = vand.u32 %v249, 65535
    %v280 = vshrl.u32 %v249, 16
    %v281 = vmul.u32 %v277, %v279
    %v282 = vmul.u32 %v277, %v280
    %v283 = vmul.u32 %v278, %v279
    %v284 = vmul.u32 %v278, %v280
    %v285 = vshll.u32 %v282, 16
    %v286 = vshrl.u32 %v282, 16
    %v287 = vshll.u32 %v283, 16
    %v288 = vshrl.u32 %v283, 16
    %vm289 = vc.u32 %v281, %v285
    %v290 = vsel %vm289, 1, 0
    %v291 = vadd.s32 %v281, %v285
    %v292 = vadd.s32 %v284, %v290
    %vm293 = vc.u32 %v291, %v287
    %v294 = vsel %vm293, 1, 0
    %v295 = vadd.s32 %v291, %v287
    %v296 = vadd.s32 %v292, %v294
    %v297 = vadd.s32 %v296, %v286
    %v298 = vadd.s32 %v297, %v288
    %v299 = vmul.u32 %v254, %v245
    %v300 = vadd.s32 %v276, %v295
    %vm301 = vc.u32 %v276, %v295
    %v302 = vadd.s32 %v298, 1
    %v303 = vsel %vm301, %v302, %v298
    %v304 = vadd.s32 %v299, %v303
    %v305 = vadd.s32 %v304, 536870912
    %v306 = vshrl.u32 %v305, 30
    %v307 = vshll.u32 %v306, 30
    %v308 = vsub.s32 %v304, %v307
    %vm309 = vcmp.lt.s32.totalorder %v308, 0
    %v310 = vsub.s32 0, %v308
    %v311 = vsel %vm309, %v310, %v308
    %v312 = vclz %v311
    %v313 = vsub.s32 %v312, 2
    %vm314 = vcmp.gt.s32.totalorder 0, %v313
    %v315 = vsel %vm314, 0, %v313
    %v316 = vsub.s32 32, %v315
    %v317 = vshll.u32 %v308, %v315
    %v318 = vshrl.u32 %v300, %v316
    %v319 = vor.u32 %v317, %v318
    %v320 = vsub.s32 4294967266, %v315
    %v321 = vadd.s32 %v320, 127
    %v322 = vshll.u32 %v321, 23
    %v323 = vor.u32 4788187, %v322
    %v324 = vand.u32 2147483647, %v323
    %v326 = vcvt.s32.f32 %v319
    %v327 = vmul.f32 %v326, %v324
    %v328 = vxor.u32 %v327, 2147483648
    %v329 = vsel %vm208, %v328, %v327
    %v330 = vsub.s32 4, %v306
    %v331 = vsel %vm208, %v330, %v306
    %v332 = vsel %vm207, %v50, %v329
    %v333 = vsel %vm207, 0, %v331
    %v334 = vmul.f32 %v332, %v332
    %v335 = vmul.f32 %v334, -0.001358992
    %v336 = vadd.f32 %v335, 0.041655596
    %v337 = vmul.f32 %v334, %v336
    %v338 = vadd.f32 %v337, -0.4999988
    %v339 = vmul.f32 %v334, %v338
    %v340 = vadd.f32 1.0, %v339
    %v341 = vmul.f32 %v332, %v332
    %v342 = vmul.f32 %v341, -0.00019511016
    %v343 = vadd.f32 %v342, 0.008332121
    %v344 = vmul.f32 %v341, %v343
    %v345 = vadd.f32 %v344, -0.16666654
    %v346 = vmul.f32 %v341, %v345
    %v347 = vadd.f32 %v346, 1.0
    %v348 = vmul.f32 %v347, %v332
    %vm349 = vweird.f32 %v50
    %v350 = vadd.s32 %v333, 3
    %v351 = vand.u32 %v350, 3
    %vm352 = vcmp.lt.s32.totalorder %v351, 2
    %vm353 = vcmp.eq.s32.totalorder %v351, 0
    %v354 = vxor.u32 %v348, 2147483648
    %v355 = vsel %vm353, %v340, %v354
    %vm356 = vcmp.eq.s32.totalorder %v351, 2
    %v357 = vxor.u32 %v340, 2147483648
    %v358 = vsel %vm356, %v357, %v348
    %v359 = vsel %vm352, %v355, %v358
    %v360 = vsel %vm349, nan, %v359
    %v361 = vld [vmem:[%s3] sm:$0xf]
    %v362 = vld [vmem:[%s3 + $0x4] sm:$0xf]
    %v363 = vld [vmem:[%s3 + $0x8] sm:$0xf]
    %v364 = vld [vmem:[%s3 + $0xc] sm:$0xf]
    %v365 = vld [vmem:[%s3 + $0x10] sm:$0xf]
    %v366 = vld [vmem:[%s3 + $0x14] sm:$0xf]
    %v367 = vld [vmem:[%s3 + $0x18] sm:$0xf]
    %v368 = vld [vmem:[%s3 + $0x1c] sm:$0xf]
    %v369 = vld [vmem:[%s3 + $0x20] sm:$0xf]
    %v370 = vld [vmem:[%s3 + $0x24] sm:$0xf]
    %v371 = vld [vmem:[%s3 + $0x28] sm:$0xf]
    %v372 = vld [vmem:[%s3 + $0x2c] sm:$0xf]
    %v373 = vld [vmem:[%s3 + $0x30] sm:$0xf]
    %v374 = vld [vmem:[%s3 + $0x34] sm:$0xf]
    %v375 = vld [vmem:[%s3 + $0x38] sm:$0xf]
    %v376 = vld [vmem:[%s3 + $0x3c] sm:$0xf]
    %v377 = vld [vmem:[%s3 + $0x40] sm:$0xf]
    %v378 = vld [vmem:[%s3 + $0x44] sm:$0xf]
    %v379 = vld [vmem:[%s3 + $0x48] sm:$0xf]
    %v380 = vld [vmem:[%s3 + $0x4c] sm:$0xf]
    %v381 = vld [vmem:[%s3 + $0x50] sm:$0xf]
    %v382 = vld [vmem:[%s3 + $0x54] sm:$0xf]
    %v383 = vld [vmem:[%s3 + $0x58] sm:$0xf]
    %v384 = vld [vmem:[%s3 + $0x5c] sm:$0xf]
    %v385 = vld [vmem:[%s3 + $0x60] sm:$0xf]
    %v386 = vld [vmem:[%s3 + $0x64] sm:$0xf]
    %v387 = vld [vmem:[%s3 + $0x68] sm:$0xf]
    %v388 = vld [vmem:[%s3 + $0x6c] sm:$0xf]
    %v389 = vld [vmem:[%s3 + $0x70] sm:$0xf]
    %v390 = vld [vmem:[%s3 + $0x74] sm:$0xf]
    %v391 = vld [vmem:[%s3 + $0x78] sm:$0xf]
    %v392 = vld [vmem:[%s3 + $0x7c] sm:$0xf]
    %v393 = vunpack.c.l.bf16 %v361
    %v394 = vunpack.c.l.bf16 %v362
    %v395 = vunpack.c.l.bf16 %v363
    %v396 = vunpack.c.l.bf16 %v364
    %v397 = vunpack.c.l.bf16 %v365
    %v398 = vunpack.c.l.bf16 %v366
    %v399 = vunpack.c.l.bf16 %v367
    %v400 = vunpack.c.l.bf16 %v368
    %v401 = vunpack.c.l.bf16 %v369
    %v402 = vunpack.c.l.bf16 %v370
    %v403 = vunpack.c.l.bf16 %v371
    %v404 = vunpack.c.l.bf16 %v372
    %v405 = vunpack.c.l.bf16 %v373
    %v406 = vunpack.c.l.bf16 %v374
    %v407 = vunpack.c.l.bf16 %v375
    %v408 = vunpack.c.l.bf16 %v376
    %v409 = vunpack.c.l.bf16 %v377
    %v410 = vunpack.c.l.bf16 %v378
    %v411 = vunpack.c.l.bf16 %v379
    %v412 = vunpack.c.l.bf16 %v380
    %v413 = vunpack.c.l.bf16 %v381
    %v414 = vunpack.c.l.bf16 %v382
    %v415 = vunpack.c.l.bf16 %v383
    %v416 = vunpack.c.l.bf16 %v384
    %v417 = vunpack.c.l.bf16 %v385
    %v418 = vunpack.c.l.bf16 %v386
    %v419 = vunpack.c.l.bf16 %v387
    %v420 = vunpack.c.l.bf16 %v388
    %v421 = vunpack.c.l.bf16 %v389
    %v422 = vunpack.c.l.bf16 %v390
    %v423 = vunpack.c.l.bf16 %v391
    %v424 = vunpack.c.l.bf16 %v392
    %v425 = vld [vmem:[%s4] sm:$0x1]
    %v427 = vperm.slane %v425, 0
    %429 = vmatpush.msra.mxu0 %v408
    %430 = vmatpush.msra.mxu0 %v407
    %431 = vmatpush.msra.mxu0 %v406
    %432 = vmatpush.msra.mxu0 %v405
    %433 = vmatpush.msra.mxu0 %v404
    %434 = vmatpush.msra.mxu0 %v403
    %435 = vmatpush.msra.mxu0 %v402
    %436 = vmatpush.msra.mxu0 %v401
    %437 = vmatpush.msra.mxu0 %v400
    %438 = vmatpush.msra.mxu0 %v399
    %439 = vmatpush.msra.mxu0 %v398
    %440 = vmatpush.msra.mxu0 %v397
    %441 = vmatpush.msra.mxu0 %v396
    %442 = vmatpush.msra.mxu0 %v395
    %443 = vmatpush.msra.mxu0 %v394
    %444 = vmatpush.msra.mxu0 %v393
    %445 = vmatmul.f32.gmra.mxu0 %v205
    %v446 = vpop.f32.mrf.mxu0
    %v447 = vadd.f32 %v427, %v446
    %448 = vdwg.mxu0
    %449 = vmatpush.msra.mxu0 %v424
    %450 = vmatpush.msra.mxu0 %v423
    %451 = vmatpush.msra.mxu0 %v422
    %452 = vmatpush.msra.mxu0 %v421
    %453 = vmatpush.msra.mxu0 %v420
    %454 = vmatpush.msra.mxu0 %v419
    %455 = vmatpush.msra.mxu0 %v418
    %456 = vmatpush.msra.mxu0 %v417
    %457 = vmatpush.msra.mxu0 %v416
    %458 = vmatpush.msra.mxu0 %v415
    %459 = vmatpush.msra.mxu0 %v414
    %460 = vmatpush.msra.mxu0 %v413
    %461 = vmatpush.msra.mxu0 %v412
    %462 = vmatpush.msra.mxu0 %v411
    %463 = vmatpush.msra.mxu0 %v410
    %464 = vmatpush.msra.mxu0 %v409
    %465 = vmatmul.f32.gmra.mxu0 %v360
    %v466 = vpop.f32.mrf.mxu0
    %v467 = vadd.f32 %v447, %v466
    %468 = vdwg.mxu0
    %v469 = vxor.u32 %v467, 2147483648
    %v470 = vmul.f32 %v469, 1.442695
    %v471 = vpow.pop %v470
    %v472 = vadd.f32 %v471, 1.0
    %v473 = vrcp.pop %v472
    %v474 = vmul.f32 %v472, %v473
    %v475 = vsub.f32 1.0, %v474
    %v476 = vmul.f32 %v473, %v475
    %v477 = vadd.f32 %v473, %v476
    %vm478 = vweird.f32 %v472
    %vm479 = vweird.f32 %v473
    %vm480 = vmor %vm478, %vm479
    %v481 = vsel %vm480, %v473, %v477
    %v482 = vand.u32 2147483647, %v472
    %vm483 = vcmp.eq.f32.partialorder %v482, 8.507059e+37
    %v484 = vand.u32 %v472, 2147483648
    %v485 = vor.u32 1.1754944e-38, %v484
    %v486 = vsel %vm483, %v485, %v481
    %v487 = vmul.f32 1.0, %v486
    %v488 = vmul.f32 %v467, %v487
    %v489 = vld [vmem:[%s5] sm:$0xf]
    %v490 = vld [vmem:[%s5 + $0x4] sm:$0xf]
    %v491 = vld [vmem:[%s5 + $0x8] sm:$0xf]
    %v492 = vld [vmem:[%s5 + $0xc] sm:$0xf]
    %v493 = vunpack.c.l.bf16 %v489
    %v494 = vunpack.c.l.bf16 %v490
    %v495 = vunpack.c.l.bf16 %v491
    %v496 = vunpack.c.l.bf16 %v492
    %v497 = vld [vmem:[%s6] sm:$0x1]
    %v499 = vperm.slane %v497, 0
    %vm501 = vcmask 261120
    %v503 = vsel %vm501, %v488, 0
    %505 = vmatpush.msra.mxu0 0.0
    %506 = vmatpush.msra.mxu0 0.0
    %507 = vmatpush.msra.mxu0 0.0
    %508 = vmatpush.msra.mxu0 0.0
    %509 = vmatpush.msra.mxu0 0.0
    %510 = vmatpush.msra.mxu0 0.0
    %511 = vmatpush.msra.mxu0 0.0
    %512 = vmatpush.msra.mxu0 0.0
    %513 = vmatpush.msra.mxu0 0.0
    %514 = vmatpush.msra.mxu0 0.0
    %515 = vmatpush.msra.mxu0 0.0
    %516 = vmatpush.msra.mxu0 0.0
    %517 = vmatpush.msra.mxu0 %v496
    %518 = vmatpush.msra.mxu0 %v495
    %519 = vmatpush.msra.mxu0 %v494
    %520 = vmatpush.msra.mxu0 %v493
    %521 = vmatmul.f32.gmra.mxu0 %v503
    %v522 = vpop.f32.mrf.mxu0
    %v523 = vadd.f32 %v499, %v522
    %524 = vdwg.mxu0
    %vm525 = vcmask 254976
    %526 = vst.msk [vmem:[#allocation2] sm:$0x3] %vm525, %v523
    %v527 = vxor.u32 %v523, 2147483648
    %v528 = vmul.f32 %v527, 1.442695
    %v529 = vpow.pop %v528
    %v530 = vadd.f32 %v529, 1.0
    %v531 = vrcp.pop %v530
    %v532 = vmul.f32 %v530, %v531
    %v533 = vsub.f32 1.0, %v532
    %v534 = vmul.f32 %v531, %v533
    %v535 = vadd.f32 %v531, %v534
    %vm536 = vweird.f32 %v530
    %vm537 = vweird.f32 %v531
    %vm538 = vmor %vm536, %vm537
    %v539 = vsel %vm538, %v531, %v535
    %v540 = vand.u32 2147483647, %v530
    %vm541 = vcmp.eq.f32.partialorder %v540, 8.507059e+37
    %v542 = vand.u32 %v530, 2147483648
    %v543 = vor.u32 1.1754944e-38, %v542
    %v544 = vsel %vm541, %v543, %v539
    %v545 = vmul.f32 1.0, %v544
    %v546 = vmul.f32 %v523, %v545
    %v547 = vpack.c.bf16 %v546, %v546
    %vm548 = vcmask 253952
    %549 = vst.msk [vmem:[%s8] sm:$0x1] %vm548, %v547
    // Predicated region
    $region30: #{ada_layer_norm_single_forward.2} parent=1 // pred_check
      _
    $region31: #{ada_layer_norm_single_forward.2} parent=1 // pred_check_branch
      %551 = sbr.rel (0) target = $region33
    $region32: #{ada_layer_norm_single_forward.2} parent=1 // pred_region
      %553 = vsyncadd [#allocation3], 0
      %s555 = sshll.u32 [#allocation2], 4
      %s556 = int_to_ptr.vmem [resolvable:$true] %s555
      %s557 = sshll.u32 %s7, 4
      %s558 = int_to_ptr.hbm [resolvable:$true] %s557
      %560 = dma.vmem_to_hbm [thread:$0]  %s556, 32, %s558, [#allocation3]
    $region33: #{ada_layer_norm_single_forward.2} parent=1 // pred_fallthru
      _
    // Predicated region
    $region34: #{ada_layer_norm_single_forward.2} parent=1 // pred_check
      _
    $region35: #{ada_layer_norm_single_forward.2} parent=1 // pred_check_branch
      %562 = sbr.rel (0) target = $region37
    $region36: #{ada_layer_norm_single_forward.2} parent=1 // pred_region
      _
    $region37: #{ada_layer_norm_single_forward.2} parent=1 // pred_fallthru
      _
    // Predicated region
    $region38: #{ada_layer_norm_single_forward.2} parent=1 // pred_check
      _
    $region39: #{ada_layer_norm_single_forward.2} parent=1 // pred_check_branch
      %564 = sbr.rel (0) target = $region41
    $region40: #{ada_layer_norm_single_forward.2} parent=1 // pred_region
      %566 = dma.done [#allocation3], 32
    $region41: #{ada_layer_norm_single_forward.2} parent=1 // pred_fallthru
      _
    // Predicated region
    $region42: #{ada_layer_norm_single_forward.2} parent=1 // pred_check
      _
    $region43: #{ada_layer_norm_single_forward.2} parent=1 // pred_check_branch
      %568 = sbr.rel (0) target = $region45
    $region44: #{ada_layer_norm_single_forward.2} parent=1 // pred_region
      _
    $region45: #{ada_layer_norm_single_forward.2} parent=1 // pred_fallthru
      _
    %569 = vsyncpa [#allocation3], 1

</llo_original>
